<compile_context>
chip_gen: v7x
topology: tpu7x:2x2x1
jax: 0.10.0
libtpu: 0.0.40
codegen_flags: <defaults>
</compile_context>

<pallas_src>
import functools

import jax
import jax.numpy as jnp
from jax.experimental import pallas as pl
from jax.experimental.pallas import tpu as pltpu


def _round_up(n, m):
    return (n + m - 1) // m * m


def _rbf_kernel(x_ref, c_ref, o_ref):
    # x_ref: (Bp, Fp), c_ref: (Op, Fp), o_ref: (Bp, Op); all f32, lane/sublane aligned.
    x = x_ref[...]
    c = c_ref[...]
    # Exact (x - c)^2 sum over the (zero-padded) feature axis.  Zero padding on BOTH
    # x and centers contributes (0 - 0)^2 = 0, so valid outputs are unchanged.
    diff = x[:, None, :] - c[None, :, :]          # (Bp, Op, Fp) = 16 vregs at 8x16x128
    o_ref[...] = jnp.sum(diff * diff, axis=-1)    # (Bp, Op)


def pad_centers(centers):
    """One-time, init-time padding of the constant parameter: (O, F) -> (Op, Fp).

    Fp is a multiple of 128 (lane axis -> full vregs / unmasked loads),
    Op a multiple of 8 (sublane axis).  Call once and reuse the result.
    """
    O, F = centers.shape
    Fp = max(_round_up(F, 128), 128)
    Op = max(_round_up(O, 8), 8)
    return jnp.pad(centers.astype(jnp.float32), ((0, Op - O), (0, Fp - F)))


@functools.partial(jax.jit, static_argnames=("out_features",))
def lenet5_orig_f7(x, centers_padded, *, out_features):
    """x: (B, in_features) f32; centers_padded: (Op, Fp) f32 from `pad_centers`.
    Returns (B, out_features) f32 with out[b, o] = sum_i (x[b,i] - centers[o,i])^2."""
    B, F = x.shape
    Op, Fp = centers_padded.shape
    assert F <= Fp, "x feature dim exceeds padded centers feature dim"
    Bp = max(_round_up(B, 8), 8)

    # Single pad HLO (fused under jit); only the activation is padded per call.
    x_p = jnp.pad(x.astype(jnp.float32), ((0, Bp - B), (0, Fp - F)))

    # Gridless call: whole arrays live in VMEM for the single kernel invocation,
    # so no software-pipelining / double-buffering machinery is instantiated.
    out_p = pl.pallas_call(
        _rbf_kernel,
        out_shape=jax.ShapeDtypeStruct((Bp, Op), jnp.float32),
        in_specs=[
            pl.BlockSpec(memory_space=pltpu.MemorySpace.VMEM),
            pl.BlockSpec(memory_space=pltpu.MemorySpace.VMEM),
        ],
        out_specs=pl.BlockSpec(memory_space=pltpu.MemorySpace.VMEM),
        cost_estimate=pl.CostEstimate(
            flops=3 * Bp * Op * Fp,                                  # sub, mul, add-reduce
            transcendentals=0,
            bytes_accessed=(Bp * Fp + Op * Fp + Bp * Op) * 4,
        ),
    )(x_p, centers_padded)

    # Drop padded batch rows / output columns (padded center rows give ||x||^2 there).
    return out_p[:B, :out_features]


if __name__ == "__main__":
    # LeNet-5 F7 layer shapes (original paper): in_features=84, out_features=10.
    B, IN_FEATURES, OUT_FEATURES = 2, 84, 10

    key = jax.random.PRNGKey(0)
    kx, kc = jax.random.split(key)
    x = jax.random.normal(kx, (B, IN_FEATURES), dtype=jnp.float32)
    # nn.init.normal_(self.centers, 0, 1) -> standard normal, deterministic here.
    centers = jax.random.normal(kc, (OUT_FEATURES, IN_FEATURES), dtype=jnp.float32)

    # Parameter-init-time padding (done once, outside the forward path).
    centers_padded = pad_centers(centers)

    out = lenet5_orig_f7(x, centers_padded, out_features=OUT_FEATURES)
    jax.block_until_ready(out)

    # Sanity check against plain-JAX reference of the PyTorch forward.
    ref = jnp.sum((x[:, None, :] - centers[None, :, :]) ** 2, axis=-1)
    assert out.shape == (B, OUT_FEATURES)
    assert jnp.allclose(out, ref, rtol=1e-5, atol=1e-5)

    print("KERNEL_OK")
</pallas_src>

<mosaic_0001>
module attributes {stable_mosaic.version = 11 : i64} {
  func.func @_rbf_kernel(%arg0: memref<8x128xf32, #tpu.memory_space<vmem>>, %arg1: memref<16x128xf32, #tpu.memory_space<vmem>>, %arg2: memref<8x16xf32, #tpu.memory_space<vmem>>) attributes {dimension_semantics = [], scalar_prefetch = 0 : i64, scratch_operands = 0 : i64, tpu.core_type = #tpu.core_type<tc>} {
    %c0 = arith.constant 0 : index
    %c0_0 = arith.constant 0 : index
    %0 = vector.load %arg0[%c0, %c0_0] : memref<8x128xf32, #tpu.memory_space<vmem>>, vector<8x128xf32>
    %c0_1 = arith.constant 0 : index
    %c0_2 = arith.constant 0 : index
    %1 = vector.load %arg1[%c0_1, %c0_2] : memref<16x128xf32, #tpu.memory_space<vmem>>, vector<16x128xf32>
    %2 = vector.shape_cast %0 : vector<8x128xf32> to vector<8x1x128xf32>
    %3 = vector.shape_cast %1 : vector<16x128xf32> to vector<1x16x128xf32>
    %4 = vector.broadcast %2 : vector<8x1x128xf32> to vector<8x16x128xf32>
    %5 = vector.broadcast %3 : vector<1x16x128xf32> to vector<8x16x128xf32>
    %6 = arith.subf %4, %5 : vector<8x16x128xf32>
    %7 = arith.mulf %6, %6 : vector<8x16x128xf32>
    %cst = arith.constant dense<0.000000e+00> : vector<8x16xf32>
    %8 = vector.multi_reduction <add>, %7, %cst [2] : vector<8x16x128xf32> to vector<8x16xf32>
    %c0_3 = arith.constant 0 : index
    %c0_4 = arith.constant 0 : index
    %9 = vector.load %arg2[%c0_3, %c0_4] : memref<8x16xf32, #tpu.memory_space<vmem>>, vector<8x16xf32>
    tpu.vector_store %arg2[%c0_3, %c0_4], %8 {strides = array<i32>} : memref<8x16xf32, #tpu.memory_space<vmem>>, vector<8x16xf32>,
    return
  }
}

</mosaic_0001>

<llo_original>
// kernel: lenet5_orig_f7.1
$region0: #{lenet5_orig_f7.1}
  #allocation0 [shape = 'u32[]', space=smem, size = 0x4, offset = 0x4, fixed_abs, tag = 'smem constant byte address 0x4 - core index']
  #allocation1 [shape = 'u32[144,128]{1,0:T(1,128)}', space=vmem, size = 0x12000, scoped, tag = 'internal scratch']
  %s0 = inlined_call_operand.vmem [shape: f32[8,128], index: 0, kind: input, shape index: {}]
  %s1 = inlined_call_operand.hbm [shape: f32[16,128], index: 1, kind: input, shape index: {}]
  %s2 = inlined_call_operand.vmem [shape: f32[8,16], index: 2, kind: output, shape index: {}]
  %s3 = sld [smem:[#allocation0]]
  $region22: #{lenet5_orig_f7.1} parent=0
    _
  %s5 = ssub.s32 1, %s3
  %s6 = scalar_select 0, %s5, %s3
  $region1: #{lenet5_orig_f7.1} parent=0
    #allocation2 [shape = 'u8[8192]{0}', space=vmem, size = 0x2000, scoped, tag = 'input window, operand 1, single buffered']
    #allocation3 [shape = 's32[1]{0}', space=sflag, size = 0x4, scoped, tag = 'scoped memory for lenet5_orig_f7.1']
    %7 = vsyncpa [#allocation3], 0
    // Predicated region
    $region2: #{lenet5_orig_f7.1} parent=1 // pred_check
      _
    $region3: #{lenet5_orig_f7.1} parent=1 // pred_check_branch
      %9 = sbr.rel (0) target = $region5
    $region4: #{lenet5_orig_f7.1} parent=1 // pred_region
      _
    $region5: #{lenet5_orig_f7.1} parent=1 // pred_fallthru
      _
    // Predicated region
    $region6: #{lenet5_orig_f7.1} parent=1 // pred_check
      _
    $region7: #{lenet5_orig_f7.1} parent=1 // pred_check_branch
      %11 = sbr.rel (0) target = $region9
    $region8: #{lenet5_orig_f7.1} parent=1 // pred_region
      %s13 = ssub.s32 256, 256
      %14 = vsyncadd [#allocation3], %s13
      %s15 = sshll.u32 [#allocation2], 4
      %s16 = int_to_ptr.vmem [resolvable:$true] %s15
      %21 = dma.hbm_to_vmem [thread:$0]  %s1, 256, %s16, [#allocation3], 128, 128, 8
    $region9: #{lenet5_orig_f7.1} parent=1 // pred_fallthru
      _
    // Predicated region
    $region10: #{lenet5_orig_f7.1} parent=1 // pred_check
      _
    $region11: #{lenet5_orig_f7.1} parent=1 // pred_check_branch
      %23 = sbr.rel (0) target = $region13
    $region12: #{lenet5_orig_f7.1} parent=1 // pred_region
      %24 = dma.done [#allocation3], 256
    $region13: #{lenet5_orig_f7.1} parent=1 // pred_fallthru
      _
    %v25 = vld [vmem:[%s0] sm:$0xff]
    %v26 = vld [vmem:[#allocation2] sm:$0xff]
    %v27 = vld [vmem:[#allocation2 + $0x8] sm:$0xff]
    %v29 = vcombine.high %v25, %v25
    %v31 = vunpack.c.l.s4 1966171168
    %v32 = vunpack.c.0.s8 %v31
    %v33 = vlaneseq
    %v34 = vshrl.u32 %v33, 7
    %v35 = vsub.s32 %v32, %v34
    %v36 = vrot.slane %v25, %v35
    %v38 = vunpack.c.l.s4 1966171168
    %v39 = vunpack.c.0.s8 %v38
    %v40 = vlaneseq
    %v41 = vshrl.u32 %v40, 7
    %v42 = vsub.s32 %v39, %v41
    %v43 = vrot.slane %v29, %v42
    %v44 = vcombine.high %v36, %v36
    %v45 = vcombine.high %v43, %v43
    %v47 = vunpack.c.l.s4 1966171168
    %v48 = vunpack.c.0.s8 %v47
    %v49 = vlaneseq
    %v50 = vshrl.u32 %v49, 7
    %v51 = vsub.s32 %v48, %v50
    %v52 = vrot.slane %v36, %v51
    %v54 = vunpack.c.l.s4 1966171168
    %v55 = vunpack.c.0.s8 %v54
    %v56 = vlaneseq
    %v57 = vshrl.u32 %v56, 7
    %v58 = vsub.s32 %v55, %v57
    %v59 = vrot.slane %v43, %v58
    %v61 = vunpack.c.l.s4 1966171168
    %v62 = vunpack.c.0.s8 %v61
    %v63 = vlaneseq
    %v64 = vshrl.u32 %v63, 7
    %v65 = vsub.s32 %v62, %v64
    %v66 = vrot.slane %v44, %v65
    %v68 = vunpack.c.l.s4 1966171168
    %v69 = vunpack.c.0.s8 %v68
    %v70 = vlaneseq
    %v71 = vshrl.u32 %v70, 7
    %v72 = vsub.s32 %v69, %v71
    %v73 = vrot.slane %v45, %v72
    %v74 = vcombine.high %v52, %v52
    %v75 = vcombine.high %v59, %v59
    %v76 = vcombine.high %v66, %v66
    %v77 = vcombine.high %v73, %v73
    %v78 = vlaneseq
    %v79 = vshrl.u32 %v78, 7
    %v80 = vsub.s32 0, %v79
    %v81 = vrot.slane %v52, %v80
    %v82 = vlaneseq
    %v83 = vshrl.u32 %v82, 7
    %v84 = vsub.s32 0, %v83
    %v85 = vrot.slane %v66, %v84
    %v86 = vlaneseq
    %v87 = vshrl.u32 %v86, 7
    %v88 = vsub.s32 0, %v87
    %v89 = vrot.slane %v74, %v88
    %v90 = vlaneseq
    %v91 = vshrl.u32 %v90, 7
    %v92 = vsub.s32 0, %v91
    %v93 = vrot.slane %v76, %v92
    %v94 = vlaneseq
    %v95 = vshrl.u32 %v94, 7
    %v96 = vsub.s32 0, %v95
    %v97 = vrot.slane %v59, %v96
    %v98 = vlaneseq
    %v99 = vshrl.u32 %v98, 7
    %v100 = vsub.s32 0, %v99
    %v101 = vrot.slane %v73, %v100
    %v102 = vlaneseq
    %v103 = vshrl.u32 %v102, 7
    %v104 = vsub.s32 0, %v103
    %v105 = vrot.slane %v75, %v104
    %v106 = vlaneseq
    %v107 = vshrl.u32 %v106, 7
    %v108 = vsub.s32 0, %v107
    %v109 = vrot.slane %v77, %v108
    %v118 = vsub.f32 %v81, %v26
    %v119 = vsub.f32 %v81, %v27
    %v120 = vsub.f32 %v85, %v26
    %v121 = vsub.f32 %v85, %v27
    %v122 = vsub.f32 %v89, %v26
    %v123 = vsub.f32 %v89, %v27
    %v124 = vsub.f32 %v93, %v26
    %v125 = vsub.f32 %v93, %v27
    %v126 = vsub.f32 %v97, %v26
    %v127 = vsub.f32 %v97, %v27
    %v128 = vsub.f32 %v101, %v26
    %v129 = vsub.f32 %v101, %v27
    %v130 = vsub.f32 %v105, %v26
    %v131 = vsub.f32 %v105, %v27
    %v132 = vsub.f32 %v109, %v26
    %v133 = vsub.f32 %v109, %v27
    %v134 = vmul.f32 %v118, %v118
    %v135 = vmul.f32 %v119, %v119
    %v136 = vmul.f32 %v120, %v120
    %v137 = vmul.f32 %v121, %v121
    %v138 = vmul.f32 %v122, %v122
    %v139 = vmul.f32 %v123, %v123
    %v140 = vmul.f32 %v124, %v124
    %v141 = vmul.f32 %v125, %v125
    %v142 = vmul.f32 %v126, %v126
    %v143 = vmul.f32 %v127, %v127
    %v144 = vmul.f32 %v128, %v128
    %v145 = vmul.f32 %v129, %v129
    %v146 = vmul.f32 %v130, %v130
    %v147 = vmul.f32 %v131, %v131
    %v148 = vmul.f32 %v132, %v132
    %v149 = vmul.f32 %v133, %v133
    %150 = vadd.xlane.f32.xlu0 %v134
    %v151 = vpop.xlane.xlu0 %150
    %152 = vadd.xlane.f32.xlu0 %v135
    %v153 = vpop.xlane.xlu0 %152
    %154 = vadd.xlane.f32.xlu0 %v136
    %v155 = vpop.xlane.xlu0 %154
    %156 = vadd.xlane.f32.xlu0 %v137
    %v157 = vpop.xlane.xlu0 %156
    %158 = vadd.xlane.f32.xlu0 %v138
    %v159 = vpop.xlane.xlu0 %158
    %160 = vadd.xlane.f32.xlu0 %v139
    %v161 = vpop.xlane.xlu0 %160
    %162 = vadd.xlane.f32.xlu0 %v140
    %v163 = vpop.xlane.xlu0 %162
    %164 = vadd.xlane.f32.xlu0 %v141
    %v165 = vpop.xlane.xlu0 %164
    %166 = vadd.xlane.f32.xlu0 %v142
    %v167 = vpop.xlane.xlu0 %166
    %168 = vadd.xlane.f32.xlu0 %v143
    %v169 = vpop.xlane.xlu0 %168
    %170 = vadd.xlane.f32.xlu0 %v144
    %v171 = vpop.xlane.xlu0 %170
    %172 = vadd.xlane.f32.xlu0 %v145
    %v173 = vpop.xlane.xlu0 %172
    %174 = vadd.xlane.f32.xlu0 %v146
    %v175 = vpop.xlane.xlu0 %174
    %176 = vadd.xlane.f32.xlu0 %v147
    %v177 = vpop.xlane.xlu0 %176
    %178 = vadd.xlane.f32.xlu0 %v148
    %v179 = vpop.xlane.xlu0 %178
    %180 = vadd.xlane.f32.xlu0 %v149
    %v181 = vpop.xlane.xlu0 %180
    %v198 = vlaneseq
    %v199 = vand.u32 %v198, 127
    %v200 = vlaneseq
    %v201 = vshrl.u32 %v200, 7
    %v202 = vsub.s32 %v199, %v201
    %v203 = vrot.slane %v151, %v202
    %v204 = vadd.s32 %v199, 4294967288
    %v205 = vlaneseq
    %v206 = vshrl.u32 %v205, 7
    %v207 = vsub.s32 %v204, %v206
    %v208 = vrot.slane %v153, %v207
    %vm209 = vcmask 130112
    %v210 = vsel %vm209, %v208, %v203
    %v211 = vlaneseq
    %v212 = vshrl.u32 %v211, 7
    %v213 = vsub.s32 %v199, %v212
    %v214 = vrot.slane %v155, %v213
    %v215 = vlaneseq
    %v216 = vshrl.u32 %v215, 7
    %v217 = vsub.s32 %v204, %v216
    %v218 = vrot.slane %v157, %v217
    %v219 = vsel %vm209, %v218, %v214
    %v220 = vlaneseq
    %v221 = vshrl.u32 %v220, 7
    %v222 = vsub.s32 %v199, %v221
    %v223 = vrot.slane %v159, %v222
    %v224 = vlaneseq
    %v225 = vshrl.u32 %v224, 7
    %v226 = vsub.s32 %v204, %v225
    %v227 = vrot.slane %v161, %v226
    %v228 = vsel %vm209, %v227, %v223
    %v229 = vlaneseq
    %v230 = vshrl.u32 %v229, 7
    %v231 = vsub.s32 %v199, %v230
    %v232 = vrot.slane %v163, %v231
    %v233 = vlaneseq
    %v234 = vshrl.u32 %v233, 7
    %v235 = vsub.s32 %v204, %v234
    %v236 = vrot.slane %v165, %v235
    %v237 = vsel %vm209, %v236, %v232
    %v238 = vlaneseq
    %v239 = vshrl.u32 %v238, 7
    %v240 = vsub.s32 %v199, %v239
    %v241 = vrot.slane %v167, %v240
    %v242 = vlaneseq
    %v243 = vshrl.u32 %v242, 7
    %v244 = vsub.s32 %v204, %v243
    %v245 = vrot.slane %v169, %v244
    %v246 = vsel %vm209, %v245, %v241
    %v247 = vlaneseq
    %v248 = vshrl.u32 %v247, 7
    %v249 = vsub.s32 %v199, %v248
    %v250 = vrot.slane %v171, %v249
    %v251 = vlaneseq
    %v252 = vshrl.u32 %v251, 7
    %v253 = vsub.s32 %v204, %v252
    %v254 = vrot.slane %v173, %v253
    %v255 = vsel %vm209, %v254, %v250
    %v256 = vlaneseq
    %v257 = vshrl.u32 %v256, 7
    %v258 = vsub.s32 %v199, %v257
    %v259 = vrot.slane %v175, %v258
    %v260 = vlaneseq
    %v261 = vshrl.u32 %v260, 7
    %v262 = vsub.s32 %v204, %v261
    %v263 = vrot.slane %v177, %v262
    %v264 = vsel %vm209, %v263, %v259
    %v265 = vlaneseq
    %v266 = vshrl.u32 %v265, 7
    %v267 = vsub.s32 %v199, %v266
    %v268 = vrot.slane %v179, %v267
    %v269 = vlaneseq
    %v270 = vshrl.u32 %v269, 7
    %v271 = vsub.s32 %v204, %v270
    %v272 = vrot.slane %v181, %v271
    %v273 = vsel %vm209, %v272, %v268
    %vm274 = vcmask 1041409
    %v275 = vsel %vm274, %v219, %v210
    %vm276 = vcmask 1042434
    %v277 = vsel %vm276, %v228, %v275
    %vm278 = vcmask 1043459
    %v279 = vsel %vm278, %v237, %v277
    %vm280 = vcmask 1044484
    %v281 = vsel %vm280, %v246, %v279
    %vm282 = vcmask 1045509
    %v283 = vsel %vm282, %v255, %v281
    %vm284 = vcmask 1046534
    %v285 = vsel %vm284, %v264, %v283
    %vm286 = vcmask 1047559
    %v287 = vsel %vm286, %v273, %v285
    %vm289 = vcmask 130048
    %290 = vst.msk [vmem:[%s2] sm:$0xff] %vm289, %v287
    // Predicated region
    $region14: #{lenet5_orig_f7.1} parent=1 // pred_check
      _
    $region15: #{lenet5_orig_f7.1} parent=1 // pred_check_branch
      %292 = sbr.rel (0) target = $region17
    $region16: #{lenet5_orig_f7.1} parent=1 // pred_region
      _
    $region17: #{lenet5_orig_f7.1} parent=1 // pred_fallthru
      _
    // Predicated region
    $region18: #{lenet5_orig_f7.1} parent=1 // pred_check
      _
    $region19: #{lenet5_orig_f7.1} parent=1 // pred_check_branch
      %294 = sbr.rel (0) target = $region21
    $region20: #{lenet5_orig_f7.1} parent=1 // pred_region
      _
    $region21: #{lenet5_orig_f7.1} parent=1 // pred_fallthru
      _
    %295 = vsyncpa [#allocation3], 1

</llo_original>
